<compile_context>
chip_gen: v7x
topology: tpu7x:2x2x1
jax: 0.10.0
libtpu: 0.0.40
codegen_flags: <defaults>
</compile_context>

<pallas_src>
import jax
import jax.numpy as jnp
from jax.experimental import pallas as pl
from jax.experimental.pallas import tpu as pltpu


_LANES = 128     # TPU vreg lane width: keep the kernel's last dim lane-dense.
_MAX_TM = 1024   # rows per tile: 1024*128*4B = 512 KiB (f32) per tile; with
                 # input+output double-buffering ~2 MiB, far under VMEM on all chips.


def _squeezed_shape(shape, dims):
    """Mirror the PyTorch module exactly: squeeze each dim in descending order,
    each resolved against the *current* shape (Python negative indexing matches
    torch's per-call dim resolution), removed only if its size is 1."""
    out = list(shape)
    for d in sorted(dims, reverse=True):
        if out[d] == 1:
            out.pop(d)
    return tuple(out)


def _copy_kernel(x_ref, o_ref):
    # Pure DMA-shaped identity copy — no VPU work, stays on the HBM roofline.
    o_ref[...] = x_ref[...]


def squeeze_pallas(x, dims):
    out_shape = _squeezed_shape(x.shape, dims)
    total = x.size

    if total == 0:
        # Nothing to copy; squeeze is pure metadata.
        return x.reshape(out_shape)

    # Flatten and make the lane axis 128-wide (pad the tail if not divisible).
    flat = x.reshape(-1)
    pad = (-total) % _LANES
    if pad:
        flat = jnp.pad(flat, (0, pad))
    M = flat.size // _LANES
    N = _LANES
    x2d = flat.reshape(M, N)

    # Row tile: full extent for small M (always legal), otherwise 1024 rows
    # (multiple of 8/16/32 sublanes, so valid for f32/bf16/int8 tiling rules).
    TM = M if M <= _MAX_TM else _MAX_TM

    y2d = pl.pallas_call(
        _copy_kernel,
        out_shape=jax.ShapeDtypeStruct((M, N), x2d.dtype),
        grid=(pl.cdiv(M, TM),),
        in_specs=[pl.BlockSpec((TM, N), lambda i: (i, 0))],
        out_specs=pl.BlockSpec((TM, N), lambda i: (i, 0)),
        input_output_aliases={0: 0},  # reuse the input buffer for the output
        compiler_params=pltpu.CompilerParams(
            dimension_semantics=("parallel",)),
    )(x2d)

    y_flat = y2d.reshape(-1)
    if pad:
        y_flat = y_flat[:total]
    # Final squeeze-to-target shape is pure metadata.
    return y_flat.reshape(out_shape)


if __name__ == "__main__":
    def ref_squeeze(t, dims):
        out = t
        for d in sorted(dims, reverse=True):
            if out.shape[d] == 1:
                out = jnp.squeeze(out, axis=d)
        return out

    # Primary example consistent with Squeeze(1, 4): size-1 axes at 1 and 4.
    x = jax.random.normal(jax.random.PRNGKey(0), (2, 1, 4, 16, 1), dtype=jnp.float32)
    dims = (1, 4)
    y = jax.block_until_ready(squeeze_pallas(x, dims))
    assert y.shape == (2, 4, 16), y.shape
    assert y.dtype == x.dtype
    assert bool(jnp.array_equal(y, ref_squeeze(x, dims))), "mismatch vs reference"

    # Lane-dense tiled path (total divisible by 128, multiple rows), bf16.
    x2 = jax.random.normal(jax.random.PRNGKey(1), (2, 1, 64, 128), dtype=jnp.bfloat16)
    y2 = jax.block_until_ready(squeeze_pallas(x2, (1,)))
    assert y2.shape == (2, 64, 128), y2.shape
    assert bool(jnp.array_equal(y2, ref_squeeze(x2, (1,)))), "mismatch vs reference (bf16)"

    # Irregular size (padding path) with a negative dim, matching module semantics.
    x3 = jax.random.normal(jax.random.PRNGKey(2), (3, 5, 1), dtype=jnp.float32)
    y3 = jax.block_until_ready(squeeze_pallas(x3, (-1,)))
    assert y3.shape == (3, 5), y3.shape
    assert bool(jnp.array_equal(y3, ref_squeeze(x3, (-1,)))), "mismatch vs reference (neg dim)"

    print("KERNEL_OK")
</pallas_src>

<mosaic_0001>
module attributes {stable_mosaic.version = 11 : i64} {
  func.func @_copy_kernel(%arg0: i32, %arg1: memref<1x128xf32, #tpu.memory_space<vmem>>, %arg2: memref<1x128xf32, #tpu.memory_space<vmem>>) attributes {dimension_semantics = [#tpu.dimension_semantics<parallel>], iteration_bounds = array<i64: 1>, scalar_prefetch = 0 : i64, scratch_operands = 0 : i64, tpu.core_type = #tpu.core_type<tc>, window_params = [{transform_indices = @transform_0, window_bounds = array<i64: 1, 128>}, {transform_indices = @transform_1, window_bounds = array<i64: 1, 128>}]} {
    %c0 = arith.constant 0 : index
    %c0_0 = arith.constant 0 : index
    %0 = vector.load %arg1[%c0, %c0_0] : memref<1x128xf32, #tpu.memory_space<vmem>>, vector<1x128xf32>
    %c0_1 = arith.constant 0 : index
    %c0_2 = arith.constant 0 : index
    %1 = vector.load %arg2[%c0_1, %c0_2] : memref<1x128xf32, #tpu.memory_space<vmem>>, vector<1x128xf32>
    tpu.vector_store %arg2[%c0_1, %c0_2], %0 {strides = array<i32>} : memref<1x128xf32, #tpu.memory_space<vmem>>, vector<1x128xf32>,
    return
  }
  func.func @transform_0(%arg0: i32) -> (i32, i32) {
    %c0_i32 = arith.constant 0 : i32
    %c0_i32_0 = arith.constant 0 : i32
    return %arg0, %c0_i32 : i32, i32
  }
  func.func @transform_1(%arg0: i32) -> (i32, i32) {
    %c0_i32 = arith.constant 0 : i32
    %c0_i32_0 = arith.constant 0 : i32
    return %arg0, %c0_i32 : i32, i32
  }
}

</mosaic_0001>

<llo_original>
// kernel: tpu_custom_call.1
$region0: #{tpu_custom_call.1}
  #allocation0 [shape = 'u32[]', space=smem, size = 0x4, offset = 0x4, fixed_abs, tag = 'smem constant byte address 0x4 - core index']
  #allocation1 [shape = 'u32[144,128]{1,0:T(1,128)}', space=vmem, size = 0x12000, scoped, tag = 'internal scratch']
  %s0 = inlined_call_operand.hbm [shape: f32[1,128], index: 0, kind: input, shape index: {}, may-alias: {0,1}]
  %s1 = inlined_call_operand.hbm [shape: f32[1,128], index: 1, kind: output, shape index: {}, may-alias: {0,1}]
  %s2 = sld [smem:[#allocation0]]
  $region18: #{tpu_custom_call.1} parent=0
    _
  %s4 = ssub.s32 1, %s2
  %s5 = scalar_select 0, %s4, %s2
  $region1: #{tpu_custom_call.1} parent=0
    #allocation2 [shape = 'u8[512]{0}', space=vmem, size = 0x400, scoped, tag = 'input window, operand 0, single buffered']
    #allocation3 [shape = 's32[1]{0}', space=sflag, size = 0x4, scoped, tag = 'scoped memory for tpu_custom_call.1']
    #allocation4 [shape = 's32[1]{0}', space=sflag, size = 0x4, scoped, tag = 'scoped memory for tpu_custom_call.1']
    #allocation5 [shape = 'u8[512]{0}', space=vmem, size = 0x400, scoped, tag = 'output window, operand 0, single buffered']
    %6 = vsyncpa [#allocation3], 0
    %7 = vsyncpa [#allocation4], 0
    // Predicated region
    $region2: #{tpu_custom_call.1} parent=1 // pred_check
      _
    $region3: #{tpu_custom_call.1} parent=1 // pred_check_branch
      %9 = sbr.rel (0) target = $region5
    $region4: #{tpu_custom_call.1} parent=1 // pred_region
      %s11 = ssub.s32 16, 16
      %12 = vsyncadd [#allocation3], %s11
      %s14 = sshll.u32 [#allocation2], 4
      %s15 = int_to_ptr.vmem [resolvable:$true] %s14
      %17 = dma.hbm_to_vmem [thread:$0]  %s0, 16, %s15, [#allocation3]
    $region5: #{tpu_custom_call.1} parent=1 // pred_fallthru
      _
    // Predicated region
    $region6: #{tpu_custom_call.1} parent=1 // pred_check
      _
    $region7: #{tpu_custom_call.1} parent=1 // pred_check_branch
      %19 = sbr.rel (0) target = $region9
    $region8: #{tpu_custom_call.1} parent=1 // pred_region
      %20 = dma.done [#allocation3], 16
    $region9: #{tpu_custom_call.1} parent=1 // pred_fallthru
      _
    %v21 = vld [vmem:[#allocation2] sm:$0x1]
    %22 = vst [vmem:[#allocation5] sm:$0x1] %v21
    // Predicated region
    $region10: #{tpu_custom_call.1} parent=1 // pred_check
      _
    $region11: #{tpu_custom_call.1} parent=1 // pred_check_branch
      %24 = sbr.rel (0) target = $region13
    $region12: #{tpu_custom_call.1} parent=1 // pred_region
      %s26 = ssub.s32 16, 16
      %27 = vsyncadd [#allocation4], %s26
      %s29 = sshll.u32 [#allocation5], 4
      %s30 = int_to_ptr.vmem [resolvable:$true] %s29
      %32 = dma.vmem_to_hbm [thread:$0]  %s30, 16, %s1, [#allocation4]
    $region13: #{tpu_custom_call.1} parent=1 // pred_fallthru
      _
    // Predicated region
    $region14: #{tpu_custom_call.1} parent=1 // pred_check
      _
    $region15: #{tpu_custom_call.1} parent=1 // pred_check_branch
      %34 = sbr.rel (0) target = $region17
    $region16: #{tpu_custom_call.1} parent=1 // pred_region
      %35 = dma.done [#allocation4], 16
    $region17: #{tpu_custom_call.1} parent=1 // pred_fallthru
      _
    %36 = vsyncpa [#allocation3], 1
    %37 = vsyncpa [#allocation4], 1

</llo_original>
